<compile_context>
chip_gen: v7x
topology: tpu7x:2x2x1
jax: 0.10.0
libtpu: 0.0.40
codegen_flags: <defaults>
</compile_context>

<pallas_src>
import functools

import jax
import jax.numpy as jnp
from jax import lax
from jax.experimental import pallas as pl
from jax.experimental.pallas import tpu as pltpu

# ---------------- model hyper-parameters (synthetic, deterministic) -----------
G_HEADS   = 2
G_NFEAT   = 32
G_NHIDDEN = 128
D_HEAD    = 64           # GATConv out_channels per head (64 in the module)
DROPOUT   = 0.2          # eval mode -> dropout layers are identity

N_NODES = 16             # nodes per graph (both graphs use the same size here)
N_EDGES = 40

ATT_NEG_SLOPE  = 0.2     # GATConv internal LeakyReLU
RELU_NEG_SLOPE = 0.01    # nn.LeakyReLU default
MASK_NEG       = -1e30


def atom_gat_kernel(x_ref, maskb_ref, w_ref, adst_ref, asrc_ref, pool_ref,
                    bias_ref, w1_ref, b1_ref, out_ref):
    """Both graphs fused: GATConv -> LeakyReLU -> mean-pool -> fc1 -> LeakyReLU -> [x, wt, x-wt]."""
    n2 = x_ref.shape[0]                       # 2 * N  (both graphs stacked on sublanes)
    n_heads = asrc_ref.shape[0]
    hd = w_ref.shape[1]                       # heads * d_head
    d = hd // n_heads

    x = x_ref[...].astype(jnp.float32)        # (2N, F)

    # shared projection (lane-dense 128-wide output)
    h_all = jnp.dot(x, w_ref[...], preferred_element_type=jnp.float32)        # (2N, HD)

    # per-node attention terms for all heads via block matrices (no per-head dots)
    e_dst = jnp.dot(h_all, adst_ref[...], preferred_element_type=jnp.float32)  # (2N, H)
    e_src = lax.dot_general(asrc_ref[...], h_all, (((1,), (1,)), ((), ())),
                            preferred_element_type=jnp.float32)                # (H, 2N)

    # scores stacked over heads: (H*2N, 2N), score[h, i, j] = e_dst_h[i] + e_src_h[j]
    maskb = maskb_ref[...]                    # (2N, 2N) additive block-diag mask (0 / -1e30)
    score_rows = []
    for h in range(n_heads):
        s_h = e_dst[:, h:h + 1] + e_src[h:h + 1, :]       # (2N, 2N)
        s_h = jnp.maximum(s_h, ATT_NEG_SLOPE * s_h)       # attention LeakyReLU(0.2)
        score_rows.append(s_h + maskb)
    s = jnp.concatenate(score_rows, axis=0)               # (H*2N, 2N)

    # head-batched masked softmax over source nodes (axis=-1)
    s = s - jnp.max(s, axis=-1, keepdims=True)
    p = jnp.exp(s)
    alpha = p * pl.reciprocal(jnp.sum(p, axis=-1, keepdims=True), approx=True)
    # TODO(synk): GATConv applies dropout to `alpha` in training mode; eval -> identity.

    # per-head weighted aggregation (block-diagonal alpha keeps graphs separated)
    head_outs = []
    for h in range(n_heads):
        a_h = alpha[h * n2:(h + 1) * n2, :]               # (2N, 2N)
        hh = h_all[:, h * d:(h + 1) * d]                  # (2N, D)
        head_outs.append(jnp.dot(a_h, hh, preferred_element_type=jnp.float32))
    gat = jnp.concatenate(head_outs, axis=-1) + bias_ref[...]     # (2N, HD)
    gat = jnp.maximum(gat, RELU_NEG_SLOPE * gat)                  # self.relu

    # global mean pool per graph as an MXU matmul (1/N folded into the pool matrix)
    pooled = jnp.dot(pool_ref[...], gat, preferred_element_type=jnp.float32)   # (2, HD)

    # fc1 + LeakyReLU  (self.dropout is identity in eval mode)
    y = jnp.dot(pooled, w1_ref[...], preferred_element_type=jnp.float32) + b1_ref[...]
    y = jnp.maximum(y, RELU_NEG_SLOPE * y)                        # (2, nhid)

    hx = y[0:1, :]
    hwt = y[1:2, :]
    out_ref[...] = jnp.concatenate([hx, hwt, hx - hwt], axis=1)   # (1, 3*nhid), lane-dense


def _edge_mask(edge_index, num_nodes):
    """Dense adjacency mask mask[target, source] = 1, plus self-loops (GATConv default).

    TODO(synk): duplicate edges in edge_index are treated as a set (dense mask); PyG's
    edge-wise softmax would weight duplicates multiply — irrelevant for simple graphs.
    """
    src, dst = edge_index[0], edge_index[1]
    mask = jnp.zeros((num_nodes, num_nodes), dtype=jnp.float32)
    mask = mask.at[dst, src].set(1.0)
    mask = jnp.maximum(mask, jnp.eye(num_nodes, dtype=jnp.float32))   # add_self_loops=True
    return mask


@functools.partial(jax.jit, static_argnames=())
def atom_attgnn_forward(x, adj, wt_x, wt_adj, params):
    """Eval-mode forward for both graphs in one fused Pallas call. Returns (1, 3*nhid)."""
    w, a_src, a_dst, bias, w1, b1 = params
    n_a, n_b = x.shape[0], wt_x.shape[0]
    n2 = n_a + n_b
    hd = G_HEADS * D_HEAD

    # ---- host-side precompute (tiny, one-off, fused under the same jit) ----
    eye_h = jnp.eye(G_HEADS, dtype=jnp.float32)
    # block matrices so that one matmul each yields all per-head attention terms
    a_dst_blk = jnp.einsum('hg,hd->hdg', eye_h, a_dst).reshape(hd, G_HEADS)   # (HD, H)
    a_src_blk = jnp.einsum('hg,gd->hgd', eye_h, a_src).reshape(G_HEADS, hd)   # (H, HD)

    # block-diagonal additive mask (0 on edges/self-loops, -1e30 elsewhere)
    mask_full = jnp.zeros((n2, n2), dtype=jnp.float32)
    mask_full = mask_full.at[:n_a, :n_a].set(_edge_mask(adj, n_a))
    mask_full = mask_full.at[n_a:, n_a:].set(_edge_mask(wt_adj, n_b))
    mask_bias = jnp.where(mask_full > 0.5, 0.0, MASK_NEG).astype(jnp.float32)

    # per-graph mean-pool matrix (1/N folded in)
    pool = jnp.zeros((2, n2), dtype=jnp.float32)
    pool = pool.at[0, :n_a].set(1.0 / n_a)
    pool = pool.at[1, n_a:].set(1.0 / n_b)

    x2 = jnp.concatenate([x, wt_x], axis=0).astype(jnp.float32)       # (2N, F)

    n_in = 9
    return pl.pallas_call(
        atom_gat_kernel,
        out_shape=jax.ShapeDtypeStruct((1, 3 * G_NHIDDEN), jnp.float32),
        in_specs=[pl.BlockSpec(memory_space=pltpu.MemorySpace.VMEM)] * n_in,
        out_specs=pl.BlockSpec(memory_space=pltpu.MemorySpace.VMEM),
    )(x2, mask_bias, w, a_dst_blk, a_src_blk, pool, bias, w1, b1)


# ---------------- pure-JAX reference (for a sanity check) --------------------
def _reference_forward(x, adj, wt_x, wt_adj, params):
    w, a_src, a_dst, bias, w1, b1 = params

    def one_graph(xg, adjg):
        n = xg.shape[0]
        mask = _edge_mask(adjg, n)
        h = xg @ w
        outs = []
        for hd in range(G_HEADS):
            hh = h[:, hd * D_HEAD:(hd + 1) * D_HEAD]
            e = hh @ a_dst[hd][:, None] + (hh @ a_src[hd][:, None]).T
            e = jnp.where(e > 0, e, ATT_NEG_SLOPE * e)
            e = jnp.where(mask > 0.5, e, -jnp.inf)
            alpha = jax.nn.softmax(e, axis=-1)
            outs.append(alpha @ hh)
        g = jnp.concatenate(outs, axis=1) + bias
        g = jnp.where(g > 0, g, RELU_NEG_SLOPE * g)
        pooled = jnp.mean(g, axis=0, keepdims=True)
        y = pooled @ w1 + b1
        return jnp.where(y > 0, y, RELU_NEG_SLOPE * y)

    hx = one_graph(x, adj)
    hwt = one_graph(wt_x, wt_adj)
    return jnp.concatenate([hx, hwt, hx - hwt], axis=1)


def init_params(key):
    k = jax.random.split(key, 6)
    scale_w = (2.0 / (G_NFEAT + D_HEAD)) ** 0.5
    w = jax.random.normal(k[0], (G_NFEAT, G_HEADS * D_HEAD), jnp.float32) * scale_w
    a_src = jax.random.normal(k[1], (G_HEADS, D_HEAD), jnp.float32) * 0.1
    a_dst = jax.random.normal(k[2], (G_HEADS, D_HEAD), jnp.float32) * 0.1
    bias = jax.random.normal(k[3], (1, G_HEADS * D_HEAD), jnp.float32) * 0.01
    scale_w1 = (2.0 / (G_HEADS * D_HEAD + G_NHIDDEN)) ** 0.5
    w1 = jax.random.normal(k[4], (G_HEADS * D_HEAD, G_NHIDDEN), jnp.float32) * scale_w1
    b1 = jax.random.normal(k[5], (1, G_NHIDDEN), jnp.float32) * 0.01
    return (w, a_src, a_dst, bias, w1, b1)


if __name__ == "__main__":
    key = jax.random.PRNGKey(0)
    kx, kwt, kp = jax.random.split(key, 3)

    params = init_params(kp)

    # node features for the two graphs
    x = jax.random.normal(kx, (N_NODES, G_NFEAT), jnp.float32)
    wt_x = jax.random.normal(kwt, (N_NODES, G_NFEAT), jnp.float32)

    # deterministic edge_index (2, E): src -> dst
    e = jnp.arange(N_EDGES, dtype=jnp.int32)
    adj = jnp.stack([e % N_NODES, (3 * e + 1) % N_NODES])           # (2, E)
    wt_adj = jnp.stack([(2 * e + 5) % N_NODES, (5 * e + 2) % N_NODES])

    out = atom_attgnn_forward(x, adj, wt_x, wt_adj, params)
    out = jax.block_until_ready(out)

    assert out.shape == (1, 3 * G_NHIDDEN), out.shape
    assert bool(jnp.all(jnp.isfinite(out)))

    ref = _reference_forward(x, adj, wt_x, wt_adj, params)
    assert bool(jnp.allclose(out, ref, rtol=2e-2, atol=2e-2)), \
        float(jnp.max(jnp.abs(out - ref)))

    print("KERNEL_OK")
</pallas_src>

<mosaic_0001>
module attributes {stable_mosaic.version = 11 : i64} {
  func.func @atom_gat_kernel(%arg0: memref<32x32xf32, #tpu.memory_space<vmem>>, %arg1: memref<32x32xf32, #tpu.memory_space<vmem>>, %arg2: memref<32x128xf32, #tpu.memory_space<vmem>>, %arg3: memref<128x2xf32, #tpu.memory_space<vmem>>, %arg4: memref<2x128xf32, #tpu.memory_space<vmem>>, %arg5: memref<2x32xf32, #tpu.memory_space<vmem>>, %arg6: memref<1x128xf32, #tpu.memory_space<vmem>>, %arg7: memref<128x128xf32, #tpu.memory_space<vmem>>, %arg8: memref<1x128xf32, #tpu.memory_space<vmem>>, %arg9: memref<1x384xf32, #tpu.memory_space<vmem>>) attributes {dimension_semantics = [], scalar_prefetch = 0 : i64, scratch_operands = 0 : i64, tpu.core_type = #tpu.core_type<tc>} {
    %c0 = arith.constant 0 : index
    %c0_0 = arith.constant 0 : index
    %0 = vector.load %arg0[%c0, %c0_0] : memref<32x32xf32, #tpu.memory_space<vmem>>, vector<32x32xf32>
    %c0_1 = arith.constant 0 : index
    %c0_2 = arith.constant 0 : index
    %1 = vector.load %arg2[%c0_1, %c0_2] : memref<32x128xf32, #tpu.memory_space<vmem>>, vector<32x128xf32>
    %cst = arith.constant dense<0.000000e+00> : vector<32x128xf32>
    %2 = tpu.matmul %0, %1, %cst {dimension_numbers = #tpu.dot_dimension_numbers<[1], [0], [0], [1], [0, 0, 1, 1], [], []>} : vector<32x32xf32>, vector<32x128xf32>, vector<32x128xf32> -> vector<32x128xf32>
    %c0_3 = arith.constant 0 : index
    %c0_4 = arith.constant 0 : index
    %3 = vector.load %arg3[%c0_3, %c0_4] : memref<128x2xf32, #tpu.memory_space<vmem>>, vector<128x2xf32>
    %cst_5 = arith.constant dense<0.000000e+00> : vector<32x2xf32>
    %4 = tpu.matmul %2, %3, %cst_5 {dimension_numbers = #tpu.dot_dimension_numbers<[1], [0], [0], [1], [0, 0, 1, 1], [], []>} : vector<32x128xf32>, vector<128x2xf32>, vector<32x2xf32> -> vector<32x2xf32>
    %c0_6 = arith.constant 0 : index
    %c0_7 = arith.constant 0 : index
    %5 = vector.load %arg4[%c0_6, %c0_7] : memref<2x128xf32, #tpu.memory_space<vmem>>, vector<2x128xf32>
    %cst_8 = arith.constant dense<0.000000e+00> : vector<2x32xf32>
    %6 = tpu.matmul %5, %2, %cst_8 {dimension_numbers = #tpu.dot_dimension_numbers<[1], [1], [0], [0], [0, 0, 1, 0], [], []>} : vector<2x128xf32>, vector<32x128xf32>, vector<2x32xf32> -> vector<2x32xf32>
    %c0_9 = arith.constant 0 : index
    %c0_10 = arith.constant 0 : index
    %7 = vector.load %arg1[%c0_9, %c0_10] : memref<32x32xf32, #tpu.memory_space<vmem>>, vector<32x32xf32>
    %8 = vector.extract_strided_slice %4 {offsets = [0, 0], sizes = [32, 1], strides = [1, 1]} : vector<32x2xf32> to vector<32x1xf32>
    %9 = vector.extract_strided_slice %6 {offsets = [0, 0], sizes = [1, 32], strides = [1, 1]} : vector<2x32xf32> to vector<1x32xf32>
    %10 = vector.broadcast %8 : vector<32x1xf32> to vector<32x32xf32>
    %11 = vector.broadcast %9 : vector<1x32xf32> to vector<32x32xf32>
    %12 = arith.addf %10, %11 : vector<32x32xf32>
    %cst_11 = arith.constant 2.000000e-01 : f32
    %13 = vector.broadcast %cst_11 : f32 to vector<32x32xf32>
    %14 = arith.mulf %13, %12 : vector<32x32xf32>
    %15 = arith.maximumf %12, %14 : vector<32x32xf32>
    %16 = arith.addf %15, %7 : vector<32x32xf32>
    %17 = vector.extract_strided_slice %4 {offsets = [0, 1], sizes = [32, 1], strides = [1, 1]} : vector<32x2xf32> to vector<32x1xf32>
    %18 = vector.extract_strided_slice %6 {offsets = [1, 0], sizes = [1, 32], strides = [1, 1]} : vector<2x32xf32> to vector<1x32xf32>
    %19 = vector.broadcast %17 : vector<32x1xf32> to vector<32x32xf32>
    %20 = vector.broadcast %18 : vector<1x32xf32> to vector<32x32xf32>
    %21 = arith.addf %19, %20 : vector<32x32xf32>
    %cst_12 = arith.constant 2.000000e-01 : f32
    %22 = vector.broadcast %cst_12 : f32 to vector<32x32xf32>
    %23 = arith.mulf %22, %21 : vector<32x32xf32>
    %24 = arith.maximumf %21, %23 : vector<32x32xf32>
    %25 = arith.addf %24, %7 : vector<32x32xf32>
    %26 = tpu.concatenate %16, %25 in 0 : vector<32x32xf32>, vector<32x32xf32> -> vector<64x32xf32>
    %cst_13 = arith.constant dense<0xFF800000> : vector<64xf32>
    %27 = vector.multi_reduction <maximumf>, %26, %cst_13 [1] : vector<64x32xf32> to vector<64xf32>
    %28 = vector.shape_cast %27 : vector<64xf32> to vector<64x1xf32>
    %29 = vector.broadcast %28 : vector<64x1xf32> to vector<64x32xf32>
    %30 = arith.subf %26, %29 : vector<64x32xf32>
    %31 = math.exp %30 : vector<64x32xf32>
    %cst_14 = arith.constant dense<0.000000e+00> : vector<64xf32>
    %32 = vector.multi_reduction <add>, %31, %cst_14 [1] : vector<64x32xf32> to vector<64xf32>
    %33 = vector.shape_cast %32 : vector<64xf32> to vector<64x1xf32>
    %34 = tpu.reciprocal %33 {approx = true} : vector<64x1xf32> -> vector<64x1xf32>
    %35 = vector.broadcast %34 : vector<64x1xf32> to vector<64x32xf32>
    %36 = arith.mulf %31, %35 : vector<64x32xf32>
    %37 = vector.extract_strided_slice %36 {offsets = [0, 0], sizes = [32, 32], strides = [1, 1]} : vector<64x32xf32> to vector<32x32xf32>
    %38 = vector.extract_strided_slice %2 {offsets = [0, 0], sizes = [32, 64], strides = [1, 1]} : vector<32x128xf32> to vector<32x64xf32>
    %cst_15 = arith.constant dense<0.000000e+00> : vector<32x64xf32>
    %39 = tpu.matmul %37, %38, %cst_15 {dimension_numbers = #tpu.dot_dimension_numbers<[1], [0], [0], [1], [0, 0, 1, 1], [], []>} : vector<32x32xf32>, vector<32x64xf32>, vector<32x64xf32> -> vector<32x64xf32>
    %40 = vector.extract_strided_slice %36 {offsets = [32, 0], sizes = [32, 32], strides = [1, 1]} : vector<64x32xf32> to vector<32x32xf32>
    %41 = vector.extract_strided_slice %2 {offsets = [0, 64], sizes = [32, 64], strides = [1, 1]} : vector<32x128xf32> to vector<32x64xf32>
    %cst_16 = arith.constant dense<0.000000e+00> : vector<32x64xf32>
    %42 = tpu.matmul %40, %41, %cst_16 {dimension_numbers = #tpu.dot_dimension_numbers<[1], [0], [0], [1], [0, 0, 1, 1], [], []>} : vector<32x32xf32>, vector<32x64xf32>, vector<32x64xf32> -> vector<32x64xf32>
    %43 = tpu.concatenate %39, %42 in 1 : vector<32x64xf32>, vector<32x64xf32> -> vector<32x128xf32>
    %c0_17 = arith.constant 0 : index
    %c0_18 = arith.constant 0 : index
    %44 = vector.load %arg6[%c0_17, %c0_18] : memref<1x128xf32, #tpu.memory_space<vmem>>, vector<1x128xf32>
    %45 = vector.broadcast %44 : vector<1x128xf32> to vector<32x128xf32>
    %46 = arith.addf %43, %45 : vector<32x128xf32>
    %cst_19 = arith.constant 0.00999999977 : f32
    %47 = vector.broadcast %cst_19 : f32 to vector<32x128xf32>
    %48 = arith.mulf %47, %46 : vector<32x128xf32>
    %49 = arith.maximumf %46, %48 : vector<32x128xf32>
    %c0_20 = arith.constant 0 : index
    %c0_21 = arith.constant 0 : index
    %50 = vector.load %arg5[%c0_20, %c0_21] : memref<2x32xf32, #tpu.memory_space<vmem>>, vector<2x32xf32>
    %cst_22 = arith.constant dense<0.000000e+00> : vector<2x128xf32>
    %51 = tpu.matmul %50, %49, %cst_22 {dimension_numbers = #tpu.dot_dimension_numbers<[1], [0], [0], [1], [0, 0, 1, 1], [], []>} : vector<2x32xf32>, vector<32x128xf32>, vector<2x128xf32> -> vector<2x128xf32>
    %c0_23 = arith.constant 0 : index
    %c0_24 = arith.constant 0 : index
    %52 = vector.load %arg7[%c0_23, %c0_24] : memref<128x128xf32, #tpu.memory_space<vmem>>, vector<128x128xf32>
    %cst_25 = arith.constant dense<0.000000e+00> : vector<2x128xf32>
    %53 = tpu.matmul %51, %52, %cst_25 {dimension_numbers = #tpu.dot_dimension_numbers<[1], [0], [0], [1], [0, 0, 1, 1], [], []>} : vector<2x128xf32>, vector<128x128xf32>, vector<2x128xf32> -> vector<2x128xf32>
    %c0_26 = arith.constant 0 : index
    %c0_27 = arith.constant 0 : index
    %54 = vector.load %arg8[%c0_26, %c0_27] : memref<1x128xf32, #tpu.memory_space<vmem>>, vector<1x128xf32>
    %55 = vector.broadcast %54 : vector<1x128xf32> to vector<2x128xf32>
    %56 = arith.addf %53, %55 : vector<2x128xf32>
    %cst_28 = arith.constant 0.00999999977 : f32
    %57 = vector.broadcast %cst_28 : f32 to vector<2x128xf32>
    %58 = arith.mulf %57, %56 : vector<2x128xf32>
    %59 = arith.maximumf %56, %58 : vector<2x128xf32>
    %60 = vector.extract_strided_slice %59 {offsets = [0, 0], sizes = [1, 128], strides = [1, 1]} : vector<2x128xf32> to vector<1x128xf32>
    %61 = vector.extract_strided_slice %59 {offsets = [1, 0], sizes = [1, 128], strides = [1, 1]} : vector<2x128xf32> to vector<1x128xf32>
    %62 = arith.subf %60, %61 : vector<1x128xf32>
    %63 = tpu.concatenate %60, %61, %62 in 1 : vector<1x128xf32>, vector<1x128xf32>, vector<1x128xf32> -> vector<1x384xf32>
    %c0_29 = arith.constant 0 : index
    %c0_30 = arith.constant 0 : index
    %64 = vector.load %arg9[%c0_29, %c0_30] : memref<1x384xf32, #tpu.memory_space<vmem>>, vector<1x384xf32>
    tpu.vector_store %arg9[%c0_29, %c0_30], %63 {strides = array<i32>} : memref<1x384xf32, #tpu.memory_space<vmem>>, vector<1x384xf32>,
    return
  }
}

</mosaic_0001>

<llo_original>
// kernel: atom_attgnn_forward.1
$region0: #{atom_attgnn_forward.1}
  #allocation0 [shape = 'u32[]', space=smem, size = 0x4, offset = 0x4, fixed_abs, tag = 'smem constant byte address 0x4 - core index']
  #allocation1 [shape = 'u32[144,128]{1,0:T(1,128)}', space=vmem, size = 0x12000, scoped, tag = 'internal scratch']
  %s0 = inlined_call_operand.vmem [shape: f32[32,32], index: 0, kind: input, shape index: {}]
  %s1 = inlined_call_operand.vmem [shape: f32[32,32], index: 1, kind: input, shape index: {}]
  %s2 = inlined_call_operand.vmem [shape: f32[32,128], index: 2, kind: input, shape index: {}]
  %s3 = inlined_call_operand.vmem [shape: f32[128,2], index: 3, kind: input, shape index: {}]
  %s4 = inlined_call_operand.vmem [shape: f32[2,128], index: 4, kind: input, shape index: {}]
  %s5 = inlined_call_operand.vmem [shape: f32[2,32], index: 5, kind: input, shape index: {}]
  %s6 = inlined_call_operand.vmem [shape: f32[1,128], index: 6, kind: input, shape index: {}]
  %s7 = inlined_call_operand.vmem [shape: f32[128,128], index: 7, kind: input, shape index: {}]
  %s8 = inlined_call_operand.vmem [shape: f32[1,128], index: 8, kind: input, shape index: {}]
  %s9 = inlined_call_operand.hbm [shape: f32[1,384], index: 9, kind: output, shape index: {}]
  %s10 = sld [smem:[#allocation0]]
  $region46: #{atom_attgnn_forward.1} parent=0
    _
  %s12 = ssub.s32 1, %s10
  %s13 = scalar_select 0, %s12, %s10
  $region1: #{atom_attgnn_forward.1} parent=0
    #allocation2 [shape = 'u8[1536]{0}', space=vmem, size = 0x800, scoped, tag = 'output window, operand 0, single buffered']
    #allocation3 [shape = 's32[1]{0}', space=sflag, size = 0x4, scoped, tag = 'scoped memory for atom_attgnn_forward.1']
    %14 = vsyncpa [#allocation3], 0
    // Predicated region
    $region2: #{atom_attgnn_forward.1} parent=1 // pred_check
      _
    $region3: #{atom_attgnn_forward.1} parent=1 // pred_check_branch
      %16 = sbr.rel (0) target = $region5
    $region4: #{atom_attgnn_forward.1} parent=1 // pred_region
      _
    $region5: #{atom_attgnn_forward.1} parent=1 // pred_fallthru
      _
    // Predicated region
    $region6: #{atom_attgnn_forward.1} parent=1 // pred_check
      _
    $region7: #{atom_attgnn_forward.1} parent=1 // pred_check_branch
      %18 = sbr.rel (0) target = $region9
    $region8: #{atom_attgnn_forward.1} parent=1 // pred_region
      _
    $region9: #{atom_attgnn_forward.1} parent=1 // pred_fallthru
      _
    // Predicated region
    $region10: #{atom_attgnn_forward.1} parent=1 // pred_check
      _
    $region11: #{atom_attgnn_forward.1} parent=1 // pred_check_branch
      %20 = sbr.rel (0) target = $region13
    $region12: #{atom_attgnn_forward.1} parent=1 // pred_region
      _
    $region13: #{atom_attgnn_forward.1} parent=1 // pred_fallthru
      _
    // Predicated region
    $region14: #{atom_attgnn_forward.1} parent=1 // pred_check
      _
    $region15: #{atom_attgnn_forward.1} parent=1 // pred_check_branch
      %22 = sbr.rel (0) target = $region17
    $region16: #{atom_attgnn_forward.1} parent=1 // pred_region
      _
    $region17: #{atom_attgnn_forward.1} parent=1 // pred_fallthru
      _
    // Predicated region
    $region18: #{atom_attgnn_forward.1} parent=1 // pred_check
      _
    $region19: #{atom_attgnn_forward.1} parent=1 // pred_check_branch
      %24 = sbr.rel (0) target = $region21
    $region20: #{atom_attgnn_forward.1} parent=1 // pred_region
      _
    $region21: #{atom_attgnn_forward.1} parent=1 // pred_fallthru
      _
    // Predicated region
    $region22: #{atom_attgnn_forward.1} parent=1 // pred_check
      _
    $region23: #{atom_attgnn_forward.1} parent=1 // pred_check_branch
      %26 = sbr.rel (0) target = $region25
    $region24: #{atom_attgnn_forward.1} parent=1 // pred_region
      _
    $region25: #{atom_attgnn_forward.1} parent=1 // pred_fallthru
      _
    // Predicated region
    $region26: #{atom_attgnn_forward.1} parent=1 // pred_check
      _
    $region27: #{atom_attgnn_forward.1} parent=1 // pred_check_branch
      %28 = sbr.rel (0) target = $region29
    $region28: #{atom_attgnn_forward.1} parent=1 // pred_region
      _
    $region29: #{atom_attgnn_forward.1} parent=1 // pred_fallthru
      _
    // Predicated region
    $region30: #{atom_attgnn_forward.1} parent=1 // pred_check
      _
    $region31: #{atom_attgnn_forward.1} parent=1 // pred_check_branch
      %30 = sbr.rel (0) target = $region33
    $region32: #{atom_attgnn_forward.1} parent=1 // pred_region
      _
    $region33: #{atom_attgnn_forward.1} parent=1 // pred_fallthru
      _
    // Predicated region
    $region34: #{atom_attgnn_forward.1} parent=1 // pred_check
      _
    $region35: #{atom_attgnn_forward.1} parent=1 // pred_check_branch
      %32 = sbr.rel (0) target = $region37
    $region36: #{atom_attgnn_forward.1} parent=1 // pred_region
      _
    $region37: #{atom_attgnn_forward.1} parent=1 // pred_fallthru
      _
    %v33 = vld [vmem:[%s0] sm:$0xff]
    %v34 = vld [vmem:[%s0 + $0x8] sm:$0xff]
    %v35 = vld [vmem:[%s0 + $0x10] sm:$0xff]
    %v36 = vld [vmem:[%s0 + $0x18] sm:$0xff]
    %v37 = vld [vmem:[%s2] sm:$0xff]
    %v38 = vld [vmem:[%s2 + $0x8] sm:$0xff]
    %v39 = vld [vmem:[%s2 + $0x10] sm:$0xff]
    %v40 = vld [vmem:[%s2 + $0x18] sm:$0xff]
    %vm41 = vcmask 261120
    %v43 = vsel %vm41, %v33, 0
    %v46 = vsel %vm41, %v34, 0
    %v49 = vsel %vm41, %v35, 0
    %v52 = vsel %vm41, %v36, 0
    %54 = vmatprep.subr.mxu0 0.0
    %55 = vmatpush1.msra.mxu0 %v37
    %56 = vmatprep.subr.mxu0 0.0
    %57 = vmatpush1.msra.mxu0 %v38
    %58 = vmatprep.subr.mxu0 0.0
    %59 = vmatpush1.msra.mxu0 %v39
    %60 = vmatprep.subr.mxu0 0.0
    %61 = vmatpush1.msra.mxu0 %v40
    %62 = vmatprep.subr.mxu0 0.0
    %63 = vmatpush1.msra.mxu0 0.0
    %64 = vmatprep.subr.mxu0 0.0
    %65 = vmatpush1.msra.mxu0 0.0
    %66 = vmatprep.subr.mxu0 0.0
    %67 = vmatpush1.msra.mxu0 0.0
    %68 = vmatprep.subr.mxu0 0.0
    %69 = vmatpush1.msra.mxu0 0.0
    %70 = vmatprep.subr.mxu0 0.0
    %71 = vmatpush1.msra.mxu0 0.0
    %72 = vmatprep.subr.mxu0 0.0
    %73 = vmatpush1.msra.mxu0 0.0
    %74 = vmatprep.subr.mxu0 0.0
    %75 = vmatpush1.msra.mxu0 0.0
    %76 = vmatprep.subr.mxu0 0.0
    %77 = vmatpush1.msra.mxu0 0.0
    %78 = vmatprep.subr.mxu0 0.0
    %79 = vmatpush1.msra.mxu0 0.0
    %80 = vmatprep.subr.mxu0 0.0
    %81 = vmatpush1.msra.mxu0 0.0
    %82 = vmatprep.subr.mxu0 0.0
    %83 = vmatpush1.msra.mxu0 0.0
    %84 = vmatprep.subr.mxu0 0.0
    %85 = vmatpush1.msra.mxu0 0.0
    %86 = vmatprep.subr.mxu0 0.0
    %87 = vmatpush1.msra.mxu0 0.0
    %88 = vmatprep.subr.mxu0 0.0
    %89 = vmatpush1.msra.mxu0 0.0
    %90 = vmatprep.subr.mxu0 0.0
    %91 = vmatpush1.msra.mxu0 0.0
    %92 = vmatprep.subr.mxu0 0.0
    %93 = vmatpush1.msra.mxu0 0.0
    %94 = vmatprep.subr.mxu0 0.0
    %95 = vmatpush1.msra.mxu0 0.0
    %96 = vmatprep.subr.mxu0 0.0
    %97 = vmatpush1.msra.mxu0 0.0
    %98 = vmatprep.subr.mxu0 0.0
    %99 = vmatpush1.msra.mxu0 0.0
    %100 = vmatprep.subr.mxu0 0.0
    %101 = vmatpush1.msra.mxu0 0.0
    %102 = vmatprep.subr.mxu0 0.0
    %103 = vmatpush1.msra.mxu0 0.0
    %104 = vmatprep.subr.mxu0 0.0
    %105 = vmatpush1.msra.mxu0 0.0
    %106 = vmatprep.subr.mxu0 0.0
    %107 = vmatpush1.msra.mxu0 0.0
    %108 = vmatprep.subr.mxu0 0.0
    %109 = vmatpush1.msra.mxu0 0.0
    %110 = vmatprep.subr.mxu0 0.0
    %111 = vmatpush1.msra.mxu0 0.0
    %112 = vmatprep.subr.mxu0 0.0
    %113 = vmatpush1.msra.mxu0 0.0
    %114 = vmatprep.subr.mxu0 0.0
    %115 = vmatpush1.msra.mxu0 0.0
    %116 = vmatprep.subr.mxu0 0.0
    %117 = vmatpush1.msra.mxu0 0.0
    %118 = vmatprep.mubr.f32.mxu0 0.0
    %119 = vmatmul.mubr.f32.gmra.mrb[0].mxu0 %v43
    %v120 = vpop.f32.mrb[0].mxu0
    %v121 = vadd.f32 0.0, %v120
    %v122 = vpop.f32.mrb[0].mxu0
    %123 = vmatprep.mubr.f32.mxu0 0.0
    %124 = vmatmul.mubr.f32.gmra.mrb[0].mxu0 %v46
    %v125 = vpop.f32.mrb[0].mxu0
    %v126 = vadd.f32 0.0, %v125
    %v127 = vpop.f32.mrb[0].mxu0
    %128 = vmatprep.mubr.f32.mxu0 0.0
    %129 = vmatmul.mubr.f32.gmra.mrb[0].mxu0 %v49
    %v130 = vpop.f32.mrb[0].mxu0
    %v131 = vadd.f32 0.0, %v130
    %v132 = vpop.f32.mrb[0].mxu0
    %133 = vmatprep.mubr.f32.mxu0 0.0
    %134 = vmatmul.mubr.f32.gmra.mrb[0].mxu0 %v52
    %v135 = vpop.f32.mrb[0].mxu0
    %v136 = vadd.f32 0.0, %v135
    %v137 = vpop.f32.mrb[0].mxu0
    %138 = vdwg.mxu0
    %v139 = vld [vmem:[%s3] sm:$0xff]
    %v140 = vld [vmem:[%s3 + $0x8] sm:$0xff]
    %v141 = vld [vmem:[%s3 + $0x10] sm:$0xff]
    %v142 = vld [vmem:[%s3 + $0x18] sm:$0xff]
    %v143 = vld [vmem:[%s3 + $0x20] sm:$0xff]
    %v144 = vld [vmem:[%s3 + $0x28] sm:$0xff]
    %v145 = vld [vmem:[%s3 + $0x30] sm:$0xff]
    %v146 = vld [vmem:[%s3 + $0x38] sm:$0xff]
    %v147 = vld [vmem:[%s3 + $0x40] sm:$0xff]
    %v148 = vld [vmem:[%s3 + $0x48] sm:$0xff]
    %v149 = vld [vmem:[%s3 + $0x50] sm:$0xff]
    %v150 = vld [vmem:[%s3 + $0x58] sm:$0xff]
    %v151 = vld [vmem:[%s3 + $0x60] sm:$0xff]
    %v152 = vld [vmem:[%s3 + $0x68] sm:$0xff]
    %v153 = vld [vmem:[%s3 + $0x70] sm:$0xff]
    %v154 = vld [vmem:[%s3 + $0x78] sm:$0xff]
    %155 = vmatprep.subr.mxu0 0.0
    %156 = vmatpush1.msra.mxu0 %v139
    %157 = vmatprep.subr.mxu0 0.0
    %158 = vmatpush1.msra.mxu0 %v140
    %159 = vmatprep.subr.mxu0 0.0
    %160 = vmatpush1.msra.mxu0 %v141
    %161 = vmatprep.subr.mxu0 0.0
    %162 = vmatpush1.msra.mxu0 %v142
    %163 = vmatprep.subr.mxu0 0.0
    %164 = vmatpush1.msra.mxu0 %v143
    %165 = vmatprep.subr.mxu0 0.0
    %166 = vmatpush1.msra.mxu0 %v144
    %167 = vmatprep.subr.mxu0 0.0
    %168 = vmatpush1.msra.mxu0 %v145
    %169 = vmatprep.subr.mxu0 0.0
    %170 = vmatpush1.msra.mxu0 %v146
    %171 = vmatprep.subr.mxu0 0.0
    %172 = vmatpush1.msra.mxu0 %v147
    %173 = vmatprep.subr.mxu0 0.0
    %174 = vmatpush1.msra.mxu0 %v148
    %175 = vmatprep.subr.mxu0 0.0
    %176 = vmatpush1.msra.mxu0 %v149
    %177 = vmatprep.subr.mxu0 0.0
    %178 = vmatpush1.msra.mxu0 %v150
    %179 = vmatprep.subr.mxu0 0.0
    %180 = vmatpush1.msra.mxu0 %v151
    %181 = vmatprep.subr.mxu0 0.0
    %182 = vmatpush1.msra.mxu0 %v152
    %183 = vmatprep.subr.mxu0 0.0
    %184 = vmatpush1.msra.mxu0 %v153
    %185 = vmatprep.subr.mxu0 0.0
    %186 = vmatpush1.msra.mxu0 %v154
    %187 = vmatprep.subr.mxu0 0.0
    %188 = vmatpush1.msra.mxu0 0.0
    %189 = vmatprep.subr.mxu0 0.0
    %190 = vmatpush1.msra.mxu0 0.0
    %191 = vmatprep.subr.mxu0 0.0
    %192 = vmatpush1.msra.mxu0 0.0
    %193 = vmatprep.subr.mxu0 0.0
    %194 = vmatpush1.msra.mxu0 0.0
    %195 = vmatprep.subr.mxu0 0.0
    %196 = vmatpush1.msra.mxu0 0.0
    %197 = vmatprep.subr.mxu0 0.0
    %198 = vmatpush1.msra.mxu0 0.0
    %199 = vmatprep.subr.mxu0 0.0
    %200 = vmatpush1.msra.mxu0 0.0
    %201 = vmatprep.subr.mxu0 0.0
    %202 = vmatpush1.msra.mxu0 0.0
    %203 = vmatprep.subr.mxu0 0.0
    %204 = vmatpush1.msra.mxu0 0.0
    %205 = vmatprep.subr.mxu0 0.0
    %206 = vmatpush1.msra.mxu0 0.0
    %207 = vmatprep.subr.mxu0 0.0
    %208 = vmatpush1.msra.mxu0 0.0
    %209 = vmatprep.subr.mxu0 0.0
    %210 = vmatpush1.msra.mxu0 0.0
    %211 = vmatprep.subr.mxu0 0.0
    %212 = vmatpush1.msra.mxu0 0.0
    %213 = vmatprep.subr.mxu0 0.0
    %214 = vmatpush1.msra.mxu0 0.0
    %215 = vmatprep.subr.mxu0 0.0
    %216 = vmatpush1.msra.mxu0 0.0
    %217 = vmatprep.subr.mxu0 0.0
    %218 = vmatpush1.msra.mxu0 0.0
    %219 = vmatprep.mubr.f32.mxu0 0.0
    %220 = vmatmul.mubr.f32.gmra.mrb[0].mxu0 %v121
    %v221 = vpop.f32.mrb[0].mxu0
    %v222 = vadd.f32 0.0, %v221
    %v223 = vpop.f32.mrb[0].mxu0
    %224 = vmatprep.mubr.f32.mxu0 0.0
    %225 = vmatmul.mubr.f32.gmra.mrb[0].mxu0 %v126
    %v226 = vpop.f32.mrb[0].mxu0
    %v227 = vadd.f32 0.0, %v226
    %v228 = vpop.f32.mrb[0].mxu0
    %229 = vmatprep.mubr.f32.mxu0 0.0
    %230 = vmatmul.mubr.f32.gmra.mrb[0].mxu0 %v131
    %v231 = vpop.f32.mrb[0].mxu0
    %v232 = vadd.f32 0.0, %v231
    %v233 = vpop.f32.mrb[0].mxu0
    %234 = vmatprep.mubr.f32.mxu0 0.0
    %235 = vmatmul.mubr.f32.gmra.mrb[0].mxu0 %v136
    %v236 = vpop.f32.mrb[0].mxu0
    %v237 = vadd.f32 0.0, %v236
    %v238 = vpop.f32.mrb[0].mxu0
    %239 = vdwg.mxu0
    %v240 = vld [vmem:[%s4] sm:$0x3]
    %241 = vmatprep.subr.mxu0 0.0
    %242 = vmatpush1.xpose.msra.mxu0 %v121
    %243 = vmatprep.subr.mxu0 0.0
    %244 = vmatpush1.xpose.msra.mxu0 %v126
    %245 = vmatprep.subr.mxu0 0.0
    %246 = vmatpush1.xpose.msra.mxu0 %v131
    %247 = vmatprep.subr.mxu0 0.0
    %248 = vmatpush1.xpose.msra.mxu0 %v136
    %249 = vmatprep.subr.mxu0 0.0
    %250 = vmatpush1.xpose.msra.mxu0 0.0
    %251 = vmatprep.subr.mxu0 0.0
    %252 = vmatpush1.xpose.msra.mxu0 0.0
    %253 = vmatprep.subr.mxu0 0.0
    %254 = vmatpush1.xpose.msra.mxu0 0.0
    %255 = vmatprep.subr.mxu0 0.0
    %256 = vmatpush1.xpose.msra.mxu0 0.0
    %257 = vmatprep.subr.mxu0 0.0
    %258 = vmatpush1.xpose.msra.mxu0 0.0
    %259 = vmatprep.subr.mxu0 0.0
    %260 = vmatpush1.xpose.msra.mxu0 0.0
    %261 = vmatprep.subr.mxu0 0.0
    %262 = vmatpush1.xpose.msra.mxu0 0.0
    %263 = vmatprep.subr.mxu0 0.0
    %264 = vmatpush1.xpose.msra.mxu0 0.0
    %265 = vmatprep.subr.mxu0 0.0
    %266 = vmatpush1.xpose.msra.mxu0 0.0
    %267 = vmatprep.subr.mxu0 0.0
    %268 = vmatpush1.xpose.msra.mxu0 0.0
    %269 = vmatprep.subr.mxu0 0.0
    %270 = vmatpush1.xpose.msra.mxu0 0.0
    %271 = vmatprep.subr.mxu0 0.0
    %272 = vmatpush1.xpose.msra.mxu0 0.0
    %273 = vmatprep.subr.mxu0 0.0
    %274 = vmatpush1.xpose.msra.mxu0 0.0
    %275 = vmatprep.subr.mxu0 0.0
    %276 = vmatpush1.xpose.msra.mxu0 0.0
    %277 = vmatprep.subr.mxu0 0.0
    %278 = vmatpush1.xpose.msra.mxu0 0.0
    %279 = vmatprep.subr.mxu0 0.0
    %280 = vmatpush1.xpose.msra.mxu0 0.0
    %281 = vmatprep.subr.mxu0 0.0
    %282 = vmatpush1.xpose.msra.mxu0 0.0
    %283 = vmatprep.subr.mxu0 0.0
    %284 = vmatpush1.xpose.msra.mxu0 0.0
    %285 = vmatprep.subr.mxu0 0.0
    %286 = vmatpush1.xpose.msra.mxu0 0.0
    %287 = vmatprep.subr.mxu0 0.0
    %288 = vmatpush1.xpose.msra.mxu0 0.0
    %289 = vmatprep.subr.mxu0 0.0
    %290 = vmatpush1.xpose.msra.mxu0 0.0
    %291 = vmatprep.subr.mxu0 0.0
    %292 = vmatpush1.xpose.msra.mxu0 0.0
    %293 = vmatprep.subr.mxu0 0.0
    %294 = vmatpush1.xpose.msra.mxu0 0.0
    %295 = vmatprep.subr.mxu0 0.0
    %296 = vmatpush1.xpose.msra.mxu0 0.0
    %297 = vmatprep.subr.mxu0 0.0
    %298 = vmatpush1.xpose.msra.mxu0 0.0
    %299 = vmatprep.subr.mxu0 0.0
    %300 = vmatpush1.xpose.msra.mxu0 0.0
    %301 = vmatprep.subr.mxu0 0.0
    %302 = vmatpush1.xpose.msra.mxu0 0.0
    %303 = vmatprep.subr.mxu0 0.0
    %304 = vmatpush1.xpose.msra.mxu0 0.0
    %305 = vmatprep.mubr.f32.mxu0 0.0
    %306 = vmatmul.mubr.f32.gmra.mrb[0].mxu0 %v240
    %v307 = vpop.f32.mrb[0].mxu0
    %v308 = vadd.f32 0.0, %v307
    %v309 = vpop.f32.mrb[0].mxu0
    %310 = vdwg.mxu0
    %v311 = vld [vmem:[%s1] sm:$0xff]
    %v312 = vld [vmem:[%s1 + $0x8] sm:$0xff]
    %v313 = vld [vmem:[%s1 + $0x10] sm:$0xff]
    %v314 = vld [vmem:[%s1 + $0x18] sm:$0xff]
    %316 = vset.pattern.permute.xlu0 0
    %317 = vperm.xlu0 %316, %v222
    %v318 = vpop.permute.xlu0 %317
    %321 = vset.pattern.permute.xlu0 0
    %322 = vperm.xlu0 %321, %v227
    %v323 = vpop.permute.xlu0 %322
    %326 = vset.pattern.permute.xlu0 0
    %327 = vperm.xlu0 %326, %v232
    %v328 = vpop.permute.xlu0 %327
    %331 = vset.pattern.permute.xlu0 0
    %332 = vperm.xlu0 %331, %v237
    %v333 = vpop.permute.xlu0 %332
    %v335 = vlaneseq
    %v336 = vshrl.u32 %v335, 7
    %v337 = vsub.s32 0, %v336
    %v338 = vrot.slane %v308, %v337
    %v339 = vadd.f32 %v318, %v338
    %v340 = vadd.f32 %v323, %v338
    %v341 = vadd.f32 %v328, %v338
    %v342 = vadd.f32 %v333, %v338
    %v343 = vmul.f32 %v339, 0.2
    %v344 = vmul.f32 %v340, 0.2
    %v345 = vmul.f32 %v341, 0.2
    %v346 = vmul.f32 %v342, 0.2
    %v347 = vmax.f32 %v339, %v343
    %v348 = vmax.f32 %v340, %v344
    %v349 = vmax.f32 %v341, %v345
    %v350 = vmax.f32 %v342, %v346
    %v351 = vadd.f32 %v347, %v311
    %v352 = vadd.f32 %v348, %v312
    %v353 = vadd.f32 %v349, %v313
    %v354 = vadd.f32 %v350, %v314
    %355 = vset.pattern.permute.xlu0 1
    %356 = vperm.xlu0 %355, %v222
    %v357 = vpop.permute.xlu0 %356
    %359 = vset.pattern.permute.xlu0 1
    %360 = vperm.xlu0 %359, %v227
    %v361 = vpop.permute.xlu0 %360
    %363 = vset.pattern.permute.xlu0 1
    %364 = vperm.xlu0 %363, %v232
    %v365 = vpop.permute.xlu0 %364
    %367 = vset.pattern.permute.xlu0 1
    %368 = vperm.xlu0 %367, %v237
    %v369 = vpop.permute.xlu0 %368
    %v371 = vlaneseq
    %v372 = vshrl.u32 %v371, 7
    %v373 = vsub.s32 1, %v372
    %v374 = vrot.slane %v308, %v373
    %v375 = vadd.f32 %v357, %v374
    %v376 = vadd.f32 %v361, %v374
    %v377 = vadd.f32 %v365, %v374
    %v378 = vadd.f32 %v369, %v374
    %v379 = vmul.f32 %v375, 0.2
    %v380 = vmul.f32 %v376, 0.2
    %v381 = vmul.f32 %v377, 0.2
    %v382 = vmul.f32 %v378, 0.2
    %v383 = vmax.f32 %v375, %v379
    %v384 = vmax.f32 %v376, %v380
    %v385 = vmax.f32 %v377, %v381
    %v386 = vmax.f32 %v378, %v382
    %v387 = vadd.f32 %v383, %v311
    %v388 = vadd.f32 %v384, %v312
    %v389 = vadd.f32 %v385, %v313
    %v390 = vadd.f32 %v386, %v314
    %v391 = vsel %vm41, %v351, -inf
    %392 = vmax.xlane.f32.xlu0 %v391
    %v393 = vpop.xlane.xlu0 %392
    %v394 = vsel %vm41, %v352, -inf
    %395 = vmax.xlane.f32.xlu0 %v394
    %v396 = vpop.xlane.xlu0 %395
    %v397 = vsel %vm41, %v353, -inf
    %398 = vmax.xlane.f32.xlu0 %v397
    %v399 = vpop.xlane.xlu0 %398
    %v400 = vsel %vm41, %v354, -inf
    %401 = vmax.xlane.f32.xlu0 %v400
    %v402 = vpop.xlane.xlu0 %401
    %v403 = vsel %vm41, %v387, -inf
    %404 = vmax.xlane.f32.xlu0 %v403
    %v405 = vpop.xlane.xlu0 %404
    %v406 = vsel %vm41, %v388, -inf
    %407 = vmax.xlane.f32.xlu0 %v406
    %v408 = vpop.xlane.xlu0 %407
    %v409 = vsel %vm41, %v389, -inf
    %410 = vmax.xlane.f32.xlu0 %v409
    %v411 = vpop.xlane.xlu0 %410
    %v412 = vsel %vm41, %v390, -inf
    %413 = vmax.xlane.f32.xlu0 %v412
    %v414 = vpop.xlane.xlu0 %413
    %v415 = vsub.f32 %v351, %v393
    %v416 = vsub.f32 %v352, %v396
    %v417 = vsub.f32 %v353, %v399
    %v418 = vsub.f32 %v354, %v402
    %v419 = vsub.f32 %v387, %v405
    %v420 = vsub.f32 %v388, %v408
    %v421 = vsub.f32 %v389, %v411
    %v422 = vsub.f32 %v390, %v414
    %v423 = vmul.f32 %v415, 1.442695
    %v424 = vpow.pop %v423
    %v425 = vmul.f32 %v416, 1.442695
    %v426 = vpow.pop %v425
    %v427 = vmul.f32 %v417, 1.442695
    %v428 = vpow.pop %v427
    %v429 = vmul.f32 %v418, 1.442695
    %v430 = vpow.pop %v429
    %v431 = vmul.f32 %v419, 1.442695
    %v432 = vpow.pop %v431
    %v433 = vmul.f32 %v420, 1.442695
    %v434 = vpow.pop %v433
    %v435 = vmul.f32 %v421, 1.442695
    %v436 = vpow.pop %v435
    %v437 = vmul.f32 %v422, 1.442695
    %v438 = vpow.pop %v437
    %v439 = vsel %vm41, %v424, 0.0
    %440 = vadd.xlane.f32.xlu0 %v439
    %v441 = vpop.xlane.xlu0 %440
    %v442 = vsel %vm41, %v426, 0.0
    %443 = vadd.xlane.f32.xlu0 %v442
    %v444 = vpop.xlane.xlu0 %443
    %v445 = vsel %vm41, %v428, 0.0
    %446 = vadd.xlane.f32.xlu0 %v445
    %v447 = vpop.xlane.xlu0 %446
    %v448 = vsel %vm41, %v430, 0.0
    %449 = vadd.xlane.f32.xlu0 %v448
    %v450 = vpop.xlane.xlu0 %449
    %v451 = vsel %vm41, %v432, 0.0
    %452 = vadd.xlane.f32.xlu0 %v451
    %v453 = vpop.xlane.xlu0 %452
    %v454 = vsel %vm41, %v434, 0.0
    %455 = vadd.xlane.f32.xlu0 %v454
    %v456 = vpop.xlane.xlu0 %455
    %v457 = vsel %vm41, %v436, 0.0
    %458 = vadd.xlane.f32.xlu0 %v457
    %v459 = vpop.xlane.xlu0 %458
    %v460 = vsel %vm41, %v438, 0.0
    %461 = vadd.xlane.f32.xlu0 %v460
    %v462 = vpop.xlane.xlu0 %461
    %v463 = vrcp.pop %v441
    %v464 = vrcp.pop %v444
    %v465 = vrcp.pop %v447
    %v466 = vrcp.pop %v450
    %v467 = vrcp.pop %v453
    %v468 = vrcp.pop %v456
    %v469 = vrcp.pop %v459
    %v470 = vrcp.pop %v462
    %v471 = vmul.f32 %v424, %v463
    %v472 = vmul.f32 %v426, %v464
    %v473 = vmul.f32 %v428, %v465
    %v474 = vmul.f32 %v430, %v466
    %v475 = vmul.f32 %v432, %v467
    %v476 = vmul.f32 %v434, %v468
    %v477 = vmul.f32 %v436, %v469
    %v478 = vmul.f32 %v438, %v470
    %v480 = vsel %vm41, %v471, 0
    %v483 = vsel %vm41, %v472, 0
    %v486 = vsel %vm41, %v473, 0
    %v489 = vsel %vm41, %v474, 0
    %491 = vmatprep.subr.mxu0 0.0
    %492 = vmatpush1.msra.mxu0 %v121
    %493 = vmatprep.subr.mxu0 0.0
    %494 = vmatpush1.msra.mxu0 %v126
    %495 = vmatprep.subr.mxu0 0.0
    %496 = vmatpush1.msra.mxu0 %v131
    %497 = vmatprep.subr.mxu0 0.0
    %498 = vmatpush1.msra.mxu0 %v136
    %499 = vmatprep.subr.mxu0 0.0
    %500 = vmatpush1.msra.mxu0 0.0
    %501 = vmatprep.subr.mxu0 0.0
    %502 = vmatpush1.msra.mxu0 0.0
    %503 = vmatprep.subr.mxu0 0.0
    %504 = vmatpush1.msra.mxu0 0.0
    %505 = vmatprep.subr.mxu0 0.0
    %506 = vmatpush1.msra.mxu0 0.0
    %507 = vmatprep.subr.mxu0 0.0
    %508 = vmatpush1.msra.mxu0 0.0
    %509 = vmatprep.subr.mxu0 0.0
    %510 = vmatpush1.msra.mxu0 0.0
    %511 = vmatprep.subr.mxu0 0.0
    %512 = vmatpush1.msra.mxu0 0.0
    %513 = vmatprep.subr.mxu0 0.0
    %514 = vmatpush1.msra.mxu0 0.0
    %515 = vmatprep.subr.mxu0 0.0
    %516 = vmatpush1.msra.mxu0 0.0
    %517 = vmatprep.subr.mxu0 0.0
    %518 = vmatpush1.msra.mxu0 0.0
    %519 = vmatprep.subr.mxu0 0.0
    %520 = vmatpush1.msra.mxu0 0.0
    %521 = vmatprep.subr.mxu0 0.0
    %522 = vmatpush1.msra.mxu0 0.0
    %523 = vmatprep.subr.mxu0 0.0
    %524 = vmatpush1.msra.mxu0 0.0
    %525 = vmatprep.subr.mxu0 0.0
    %526 = vmatpush1.msra.mxu0 0.0
    %527 = vmatprep.subr.mxu0 0.0
    %528 = vmatpush1.msra.mxu0 0.0
    %529 = vmatprep.subr.mxu0 0.0
    %530 = vmatpush1.msra.mxu0 0.0
    %531 = vmatprep.subr.mxu0 0.0
    %532 = vmatpush1.msra.mxu0 0.0
    %533 = vmatprep.subr.mxu0 0.0
    %534 = vmatpush1.msra.mxu0 0.0
    %535 = vmatprep.subr.mxu0 0.0
    %536 = vmatpush1.msra.mxu0 0.0
    %537 = vmatprep.subr.mxu0 0.0
    %538 = vmatpush1.msra.mxu0 0.0
    %539 = vmatprep.subr.mxu0 0.0
    %540 = vmatpush1.msra.mxu0 0.0
    %541 = vmatprep.subr.mxu0 0.0
    %542 = vmatpush1.msra.mxu0 0.0
    %543 = vmatprep.subr.mxu0 0.0
    %544 = vmatpush1.msra.mxu0 0.0
    %545 = vmatprep.subr.mxu0 0.0
    %546 = vmatpush1.msra.mxu0 0.0
    %547 = vmatprep.subr.mxu0 0.0
    %548 = vmatpush1.msra.mxu0 0.0
    %549 = vmatprep.subr.mxu0 0.0
    %550 = vmatpush1.msra.mxu0 0.0
    %551 = vmatprep.subr.mxu0 0.0
    %552 = vmatpush1.msra.mxu0 0.0
    %553 = vmatprep.subr.mxu0 0.0
    %554 = vmatpush1.msra.mxu0 0.0
    %555 = vmatprep.mubr.f32.mxu0 0.0
    %556 = vmatmul.mubr.f32.gmra.mrb[0].mxu0 %v480
    %v557 = vpop.f32.mrb[0].mxu0
    %v558 = vadd.f32 0.0, %v557
    %v559 = vpop.f32.mrb[0].mxu0
    %560 = vmatprep.mubr.f32.mxu0 0.0
    %561 = vmatmul.mubr.f32.gmra.mrb[0].mxu0 %v483
    %v562 = vpop.f32.mrb[0].mxu0
    %v563 = vadd.f32 0.0, %v562
    %v564 = vpop.f32.mrb[0].mxu0
    %565 = vmatprep.mubr.f32.mxu0 0.0
    %566 = vmatmul.mubr.f32.gmra.mrb[0].mxu0 %v486
    %v567 = vpop.f32.mrb[0].mxu0
    %v568 = vadd.f32 0.0, %v567
    %v569 = vpop.f32.mrb[0].mxu0
    %570 = vmatprep.mubr.f32.mxu0 0.0
    %571 = vmatmul.mubr.f32.gmra.mrb[0].mxu0 %v489
    %v572 = vpop.f32.mrb[0].mxu0
    %v573 = vadd.f32 0.0, %v572
    %v574 = vpop.f32.mrb[0].mxu0
    %575 = vdwg.mxu0
    %580 = vrot.lane.b32.xlu0 %v121, 64
    %v581 = vpop.permute.xlu0 %580
    %582 = vrot.lane.b32.xlu0 %v126, 64
    %v583 = vpop.permute.xlu0 %582
    %584 = vrot.lane.b32.xlu0 %v131, 64
    %v585 = vpop.permute.xlu0 %584
    %586 = vrot.lane.b32.xlu0 %v136, 64
    %v587 = vpop.permute.xlu0 %586
    %v593 = vsel %vm41, %v475, 0
    %v596 = vsel %vm41, %v476, 0
    %v599 = vsel %vm41, %v477, 0
    %v602 = vsel %vm41, %v478, 0
    %604 = vmatprep.subr.mxu0 0.0
    %605 = vmatpush1.msra.mxu0 %v581
    %606 = vmatprep.subr.mxu0 0.0
    %607 = vmatpush1.msra.mxu0 %v583
    %608 = vmatprep.subr.mxu0 0.0
    %609 = vmatpush1.msra.mxu0 %v585
    %610 = vmatprep.subr.mxu0 0.0
    %611 = vmatpush1.msra.mxu0 %v587
    %612 = vmatprep.subr.mxu0 0.0
    %613 = vmatpush1.msra.mxu0 0.0
    %614 = vmatprep.subr.mxu0 0.0
    %615 = vmatpush1.msra.mxu0 0.0
    %616 = vmatprep.subr.mxu0 0.0
    %617 = vmatpush1.msra.mxu0 0.0
    %618 = vmatprep.subr.mxu0 0.0
    %619 = vmatpush1.msra.mxu0 0.0
    %620 = vmatprep.subr.mxu0 0.0
    %621 = vmatpush1.msra.mxu0 0.0
    %622 = vmatprep.subr.mxu0 0.0
    %623 = vmatpush1.msra.mxu0 0.0
    %624 = vmatprep.subr.mxu0 0.0
    %625 = vmatpush1.msra.mxu0 0.0
    %626 = vmatprep.subr.mxu0 0.0
    %627 = vmatpush1.msra.mxu0 0.0
    %628 = vmatprep.subr.mxu0 0.0
    %629 = vmatpush1.msra.mxu0 0.0
    %630 = vmatprep.subr.mxu0 0.0
    %631 = vmatpush1.msra.mxu0 0.0
    %632 = vmatprep.subr.mxu0 0.0
    %633 = vmatpush1.msra.mxu0 0.0
    %634 = vmatprep.subr.mxu0 0.0
    %635 = vmatpush1.msra.mxu0 0.0
    %636 = vmatprep.subr.mxu0 0.0
    %637 = vmatpush1.msra.mxu0 0.0
    %638 = vmatprep.subr.mxu0 0.0
    %639 = vmatpush1.msra.mxu0 0.0
    %640 = vmatprep.subr.mxu0 0.0
    %641 = vmatpush1.msra.mxu0 0.0
    %642 = vmatprep.subr.mxu0 0.0
    %643 = vmatpush1.msra.mxu0 0.0
    %644 = vmatprep.subr.mxu0 0.0
    %645 = vmatpush1.msra.mxu0 0.0
    %646 = vmatprep.subr.mxu0 0.0
    %647 = vmatpush1.msra.mxu0 0.0
    %648 = vmatprep.subr.mxu0 0.0
    %649 = vmatpush1.msra.mxu0 0.0
    %650 = vmatprep.subr.mxu0 0.0
    %651 = vmatpush1.msra.mxu0 0.0
    %652 = vmatprep.subr.mxu0 0.0
    %653 = vmatpush1.msra.mxu0 0.0
    %654 = vmatprep.subr.mxu0 0.0
    %655 = vmatpush1.msra.mxu0 0.0
    %656 = vmatprep.subr.mxu0 0.0
    %657 = vmatpush1.msra.mxu0 0.0
    %658 = vmatprep.subr.mxu0 0.0
    %659 = vmatpush1.msra.mxu0 0.0
    %660 = vmatprep.subr.mxu0 0.0
    %661 = vmatpush1.msra.mxu0 0.0
    %662 = vmatprep.subr.mxu0 0.0
    %663 = vmatpush1.msra.mxu0 0.0
    %664 = vmatprep.subr.mxu0 0.0
    %665 = vmatpush1.msra.mxu0 0.0
    %666 = vmatprep.subr.mxu0 0.0
    %667 = vmatpush1.msra.mxu0 0.0
    %668 = vmatprep.mubr.f32.mxu0 0.0
    %669 = vmatmul.mubr.f32.gmra.mrb[0].mxu0 %v593
    %v670 = vpop.f32.mrb[0].mxu0
    %v671 = vadd.f32 0.0, %v670
    %v672 = vpop.f32.mrb[0].mxu0
    %673 = vmatprep.mubr.f32.mxu0 0.0
    %674 = vmatmul.mubr.f32.gmra.mrb[0].mxu0 %v596
    %v675 = vpop.f32.mrb[0].mxu0
    %v676 = vadd.f32 0.0, %v675
    %v677 = vpop.f32.mrb[0].mxu0
    %678 = vmatprep.mubr.f32.mxu0 0.0
    %679 = vmatmul.mubr.f32.gmra.mrb[0].mxu0 %v599
    %v680 = vpop.f32.mrb[0].mxu0
    %v681 = vadd.f32 0.0, %v680
    %v682 = vpop.f32.mrb[0].mxu0
    %683 = vmatprep.mubr.f32.mxu0 0.0
    %684 = vmatmul.mubr.f32.gmra.mrb[0].mxu0 %v602
    %v685 = vpop.f32.mrb[0].mxu0
    %v686 = vadd.f32 0.0, %v685
    %v687 = vpop.f32.mrb[0].mxu0
    %688 = vdwg.mxu0
    %693 = vrot.lane.b32.xlu0 %v671, 64
    %v694 = vpop.permute.xlu0 %693
    %695 = vrot.lane.b32.xlu0 %v676, 64
    %v696 = vpop.permute.xlu0 %695
    %697 = vrot.lane.b32.xlu0 %v681, 64
    %v698 = vpop.permute.xlu0 %697
    %699 = vrot.lane.b32.xlu0 %v686, 64
    %v700 = vpop.permute.xlu0 %699
    %vm705 = vcmask 523264
    %v706 = vsel %vm705, %v558, %v694
    %v707 = vsel %vm705, %v563, %v696
    %v708 = vsel %vm705, %v568, %v698
    %v709 = vsel %vm705, %v573, %v700
    %v710 = vld [vmem:[%s6] sm:$0x1]
    %v712 = vlaneseq
    %v713 = vshrl.u32 %v712, 7
    %v714 = vsub.s32 0, %v713
    %v715 = vrot.slane %v710, %v714
    %v717 = vadd.f32 %v706, %v715
    %v718 = vadd.f32 %v707, %v715
    %v719 = vadd.f32 %v708, %v715
    %v720 = vadd.f32 %v709, %v715
    %v721 = vmul.f32 %v717, 0.01
    %v722 = vmul.f32 %v718, 0.01
    %v723 = vmul.f32 %v719, 0.01
    %v724 = vmul.f32 %v720, 0.01
    %v725 = vmax.f32 %v717, %v721
    %v726 = vmax.f32 %v718, %v722
    %v727 = vmax.f32 %v719, %v723
    %v728 = vmax.f32 %v720, %v724
    %v729 = vld [vmem:[%s5] sm:$0x3]
    %v731 = vsel %vm41, %v729, 0
    %733 = vmatprep.subr.mxu0 0.0
    %734 = vmatpush1.msra.mxu0 %v725
    %735 = vmatprep.subr.mxu0 0.0
    %736 = vmatpush1.msra.mxu0 %v726
    %737 = vmatprep.subr.mxu0 0.0
    %738 = vmatpush1.msra.mxu0 %v727
    %739 = vmatprep.subr.mxu0 0.0
    %740 = vmatpush1.msra.mxu0 %v728
    %741 = vmatprep.subr.mxu0 0.0
    %742 = vmatpush1.msra.mxu0 0.0
    %743 = vmatprep.subr.mxu0 0.0
    %744 = vmatpush1.msra.mxu0 0.0
    %745 = vmatprep.subr.mxu0 0.0
    %746 = vmatpush1.msra.mxu0 0.0
    %747 = vmatprep.subr.mxu0 0.0
    %748 = vmatpush1.msra.mxu0 0.0
    %749 = vmatprep.subr.mxu0 0.0
    %750 = vmatpush1.msra.mxu0 0.0
    %751 = vmatprep.subr.mxu0 0.0
    %752 = vmatpush1.msra.mxu0 0.0
    %753 = vmatprep.subr.mxu0 0.0
    %754 = vmatpush1.msra.mxu0 0.0
    %755 = vmatprep.subr.mxu0 0.0
    %756 = vmatpush1.msra.mxu0 0.0
    %757 = vmatprep.subr.mxu0 0.0
    %758 = vmatpush1.msra.mxu0 0.0
    %759 = vmatprep.subr.mxu0 0.0
    %760 = vmatpush1.msra.mxu0 0.0
    %761 = vmatprep.subr.mxu0 0.0
    %762 = vmatpush1.msra.mxu0 0.0
    %763 = vmatprep.subr.mxu0 0.0
    %764 = vmatpush1.msra.mxu0 0.0
    %765 = vmatprep.subr.mxu0 0.0
    %766 = vmatpush1.msra.mxu0 0.0
    %767 = vmatprep.subr.mxu0 0.0
    %768 = vmatpush1.msra.mxu0 0.0
    %769 = vmatprep.subr.mxu0 0.0
    %770 = vmatpush1.msra.mxu0 0.0
    %771 = vmatprep.subr.mxu0 0.0
    %772 = vmatpush1.msra.mxu0 0.0
    %773 = vmatprep.subr.mxu0 0.0
    %774 = vmatpush1.msra.mxu0 0.0
    %775 = vmatprep.subr.mxu0 0.0
    %776 = vmatpush1.msra.mxu0 0.0
    %777 = vmatprep.subr.mxu0 0.0
    %778 = vmatpush1.msra.mxu0 0.0
    %779 = vmatprep.subr.mxu0 0.0
    %780 = vmatpush1.msra.mxu0 0.0
    %781 = vmatprep.subr.mxu0 0.0
    %782 = vmatpush1.msra.mxu0 0.0
    %783 = vmatprep.subr.mxu0 0.0
    %784 = vmatpush1.msra.mxu0 0.0
    %785 = vmatprep.subr.mxu0 0.0
    %786 = vmatpush1.msra.mxu0 0.0
    %787 = vmatprep.subr.mxu0 0.0
    %788 = vmatpush1.msra.mxu0 0.0
    %789 = vmatprep.subr.mxu0 0.0
    %790 = vmatpush1.msra.mxu0 0.0
    %791 = vmatprep.subr.mxu0 0.0
    %792 = vmatpush1.msra.mxu0 0.0
    %793 = vmatprep.subr.mxu0 0.0
    %794 = vmatpush1.msra.mxu0 0.0
    %795 = vmatprep.subr.mxu0 0.0
    %796 = vmatpush1.msra.mxu0 0.0
    %797 = vmatprep.mubr.f32.mxu0 0.0
    %798 = vmatmul.mubr.f32.gmra.mrb[0].mxu0 %v731
    %v799 = vpop.f32.mrb[0].mxu0
    %v800 = vadd.f32 0.0, %v799
    %v801 = vpop.f32.mrb[0].mxu0
    %802 = vdwg.mxu0
    %v803 = vld [vmem:[%s7] sm:$0xff]
    %v804 = vld [vmem:[%s7 + $0x8] sm:$0xff]
    %v805 = vld [vmem:[%s7 + $0x10] sm:$0xff]
    %v806 = vld [vmem:[%s7 + $0x18] sm:$0xff]
    %v807 = vld [vmem:[%s7 + $0x20] sm:$0xff]
    %v808 = vld [vmem:[%s7 + $0x28] sm:$0xff]
    %v809 = vld [vmem:[%s7 + $0x30] sm:$0xff]
    %v810 = vld [vmem:[%s7 + $0x38] sm:$0xff]
    %v811 = vld [vmem:[%s7 + $0x40] sm:$0xff]
    %v812 = vld [vmem:[%s7 + $0x48] sm:$0xff]
    %v813 = vld [vmem:[%s7 + $0x50] sm:$0xff]
    %v814 = vld [vmem:[%s7 + $0x58] sm:$0xff]
    %v815 = vld [vmem:[%s7 + $0x60] sm:$0xff]
    %v816 = vld [vmem:[%s7 + $0x68] sm:$0xff]
    %v817 = vld [vmem:[%s7 + $0x70] sm:$0xff]
    %v818 = vld [vmem:[%s7 + $0x78] sm:$0xff]
    %v819 = vld [vmem:[%s8] sm:$0x1]
    %v821 = vlaneseq
    %v822 = vshrl.u32 %v821, 7
    %v823 = vsub.s32 0, %v822
    %v824 = vrot.slane %v819, %v823
    %826 = vmatprep.subr.mxu0 0.0
    %827 = vmatpush1.msra.mxu0 %v803
    %828 = vmatprep.subr.mxu0 0.0
    %829 = vmatpush1.msra.mxu0 %v804
    %830 = vmatprep.subr.mxu0 0.0
    %831 = vmatpush1.msra.mxu0 %v805
    %832 = vmatprep.subr.mxu0 0.0
    %833 = vmatpush1.msra.mxu0 %v806
    %834 = vmatprep.subr.mxu0 0.0
    %835 = vmatpush1.msra.mxu0 %v807
    %836 = vmatprep.subr.mxu0 0.0
    %837 = vmatpush1.msra.mxu0 %v808
    %838 = vmatprep.subr.mxu0 0.0
    %839 = vmatpush1.msra.mxu0 %v809
    %840 = vmatprep.subr.mxu0 0.0
    %841 = vmatpush1.msra.mxu0 %v810
    %842 = vmatprep.subr.mxu0 0.0
    %843 = vmatpush1.msra.mxu0 %v811
    %844 = vmatprep.subr.mxu0 0.0
    %845 = vmatpush1.msra.mxu0 %v812
    %846 = vmatprep.subr.mxu0 0.0
    %847 = vmatpush1.msra.mxu0 %v813
    %848 = vmatprep.subr.mxu0 0.0
    %849 = vmatpush1.msra.mxu0 %v814
    %850 = vmatprep.subr.mxu0 0.0
    %851 = vmatpush1.msra.mxu0 %v815
    %852 = vmatprep.subr.mxu0 0.0
    %853 = vmatpush1.msra.mxu0 %v816
    %854 = vmatprep.subr.mxu0 0.0
    %855 = vmatpush1.msra.mxu0 %v817
    %856 = vmatprep.subr.mxu0 0.0
    %857 = vmatpush1.msra.mxu0 %v818
    %858 = vmatprep.subr.mxu0 0.0
    %859 = vmatpush1.msra.mxu0 0.0
    %860 = vmatprep.subr.mxu0 0.0
    %861 = vmatpush1.msra.mxu0 0.0
    %862 = vmatprep.subr.mxu0 0.0
    %863 = vmatpush1.msra.mxu0 0.0
    %864 = vmatprep.subr.mxu0 0.0
    %865 = vmatpush1.msra.mxu0 0.0
    %866 = vmatprep.subr.mxu0 0.0
    %867 = vmatpush1.msra.mxu0 0.0
    %868 = vmatprep.subr.mxu0 0.0
    %869 = vmatpush1.msra.mxu0 0.0
    %870 = vmatprep.subr.mxu0 0.0
    %871 = vmatpush1.msra.mxu0 0.0
    %872 = vmatprep.subr.mxu0 0.0
    %873 = vmatpush1.msra.mxu0 0.0
    %874 = vmatprep.subr.mxu0 0.0
    %875 = vmatpush1.msra.mxu0 0.0
    %876 = vmatprep.subr.mxu0 0.0
    %877 = vmatpush1.msra.mxu0 0.0
    %878 = vmatprep.subr.mxu0 0.0
    %879 = vmatpush1.msra.mxu0 0.0
    %880 = vmatprep.subr.mxu0 0.0
    %881 = vmatpush1.msra.mxu0 0.0
    %882 = vmatprep.subr.mxu0 0.0
    %883 = vmatpush1.msra.mxu0 0.0
    %884 = vmatprep.subr.mxu0 0.0
    %885 = vmatpush1.msra.mxu0 0.0
    %886 = vmatprep.subr.mxu0 0.0
    %887 = vmatpush1.msra.mxu0 0.0
    %888 = vmatprep.subr.mxu0 0.0
    %889 = vmatpush1.msra.mxu0 0.0
    %890 = vmatprep.mubr.f32.mxu0 0.0
    %891 = vmatmul.mubr.f32.gmra.mrb[0].mxu0 %v800
    %v892 = vpop.f32.mrb[0].mxu0
    %v893 = vadd.f32 %v824, %v892
    %v894 = vpop.f32.mrb[0].mxu0
    %895 = vdwg.mxu0
    %v896 = vmul.f32 %v893, 0.01
    %v897 = vmax.f32 %v893, %v896
    %v899 = vrot.slane %v897, 1
    %v901 = vsub.f32 %v897, %v899
    %v903 = vcombine.low %v897, %v899
    %v905 = vunpack.c.l.s4 1966171168
    %v906 = vunpack.c.0.s8 %v905
    %v907 = vlaneseq
    %v908 = vshrl.u32 %v907, 7
    %v909 = vsub.s32 %v906, %v908
    %v910 = vrot.slane %v903, %v909
    %v912 = vunpack.c.l.s4 1966171168
    %v913 = vunpack.c.0.s8 %v912
    %v914 = vlaneseq
    %v915 = vshrl.u32 %v914, 7
    %v916 = vsub.s32 %v913, %v915
    %v917 = vrot.slane %v901, %v916
    %v918 = vcombine.low %v910, %v917
    %v920 = vunpack.c.l.s4 1966171168
    %v921 = vunpack.c.0.s8 %v920
    %v922 = vlaneseq
    %v923 = vshrl.u32 %v922, 7
    %v924 = vsub.s32 %v921, %v923
    %v925 = vrot.slane %v918, %v924
    %v927 = vlaneseq
    %vm928 = vcmp.ge.s32.totalorder %v927, 0
    %vm929 = vcmp.lt.s32.totalorder %v927, 384
    %vm930 = vmand %vm928, %vm929
    %931 = vst.msk [vmem:[#allocation2] sm:$0x7] %vm930, %v925
    // Predicated region
    $region38: #{atom_attgnn_forward.1} parent=1 // pred_check
      _
    $region39: #{atom_attgnn_forward.1} parent=1 // pred_check_branch
      %933 = sbr.rel (0) target = $region41
    $region40: #{atom_attgnn_forward.1} parent=1 // pred_region
      %s935 = ssub.s32 48, 48
      %936 = vsyncadd [#allocation3], %s935
      %s938 = sshll.u32 [#allocation2], 4
      %s939 = int_to_ptr.vmem [resolvable:$true] %s938
      %941 = dma.vmem_to_hbm [thread:$0]  %s939, 48, %s9, [#allocation3]
    $region41: #{atom_attgnn_forward.1} parent=1 // pred_fallthru
      _
    // Predicated region
    $region42: #{atom_attgnn_forward.1} parent=1 // pred_check
      _
    $region43: #{atom_attgnn_forward.1} parent=1 // pred_check_branch
      %943 = sbr.rel (0) target = $region45
    $region44: #{atom_attgnn_forward.1} parent=1 // pred_region
      %944 = dma.done [#allocation3], 48
    $region45: #{atom_attgnn_forward.1} parent=1 // pred_fallthru
      _
    %945 = vsyncpa [#allocation3], 1

</llo_original>
